<compile_context>
chip_gen: v6e
topology: v6e:2x2x1
jax: 0.10.0
libtpu: 0.0.40
codegen_flags: <defaults>
</compile_context>

<pallas_src>
import functools

import jax
import jax.numpy as jnp
from jax.experimental import pallas as pl
from jax.experimental.pallas import tpu as pltpu

DEFAULT_COEF = 0.97
DEFAULT_TILE_B = 256    # sublane tile (multiple of 8)
DEFAULT_TILE_T = 2048   # lane tile (multiple of 128); 2 MiB per f32 buffer


def _preemphasis_kernel(x_ref, o_ref, carry_ref, *, coef):
    t_idx = pl.program_id(1)

    x = x_ref[...].astype(jnp.float32)            # (TB, TT)

    # First time-tile of this batch-tile: the sample "before" t=0 is the
    # reflect-pad value x[:, 1]. Otherwise carry_ref already holds the last
    # column of the previous time-tile of the same batch-tile.
    @pl.when(t_idx == 0)
    def _():
        carry_ref[...] = x[:, 1:2]

    prev0 = carry_ref[...]                        # (TB, 1)

    # prev[:, t] = x[:, t-1] for t >= 1 (column 0 wraps; patched below).
    prev = pltpu.roll(x, shift=1, axis=1)

    o_ref[...] = (x - coef * prev).astype(o_ref.dtype)
    o_ref[:, 0:1] = (x[:, 0:1] - coef * prev0).astype(o_ref.dtype)

    # Carry this tile's last sample into the next time-tile.
    carry_ref[...] = x[:, -1:]


def pre_emphasis(x, coef=DEFAULT_COEF, *, tile_b=DEFAULT_TILE_B,
                 tile_t=DEFAULT_TILE_T):
    """(B, T) signal -> (B, T) pre-emphasized signal y[t] = x[t] - coef*x[t-1]."""
    B, T = x.shape
    assert T >= 2, "reflect padding of size 1 needs at least 2 samples"

    # Block dims must be multiples of (8, 128) or equal to the full extent.
    tb = B if B < tile_b else tile_b
    tt = T if T < tile_t else tile_t
    grid = (pl.cdiv(B, tb), pl.cdiv(T, tt))

    itemsize = jnp.dtype(x.dtype).itemsize
    kernel = functools.partial(_preemphasis_kernel, coef=float(coef))

    # TODO(synk): for tiny batch (B < 8) with long T, fold time into sublanes
    # (reshape (B, T) -> (B*nrows, TILE_T)) to fill all 8 sublanes per vreg.
    return pl.pallas_call(
        kernel,
        out_shape=jax.ShapeDtypeStruct((B, T), x.dtype),
        grid_spec=pltpu.PrefetchScalarGridSpec(
            num_scalar_prefetch=0,
            grid=grid,
            in_specs=[pl.BlockSpec((tb, tt), lambda b, t: (b, t))],
            out_specs=pl.BlockSpec((tb, tt), lambda b, t: (b, t)),
            scratch_shapes=[pltpu.VMEM((tb, 1), jnp.float32)],
        ),
        compiler_params=pltpu.CompilerParams(
            dimension_semantics=("parallel", "arbitrary"),
            vmem_limit_bytes=64 * 1024 * 1024,
        ),
        cost_estimate=pl.CostEstimate(
            flops=2 * B * T,
            transcendentals=0,
            bytes_accessed=2 * B * T * itemsize,
        ),
    )(x)


if __name__ == "__main__":
    def ref_fn(x, coef=DEFAULT_COEF):
        # reflect-pad 1 on the left + conv1d with [-coef, 1.0]
        padded = jnp.concatenate([x[:, 1:2], x], axis=1)
        return x - coef * padded[:, :-1]

    # 1) Toy shape implied by the module's 2-D (batch, samples) input.
    #    Single full-extent block, grid (1, 1).
    key = jax.random.PRNGKey(0)
    B, T = 2, 16
    x = jax.random.normal(key, (B, T), dtype=jnp.float32)
    y = jax.block_until_ready(pre_emphasis(x))
    assert y.shape == (B, T) and y.dtype == jnp.float32
    assert jnp.allclose(y, ref_fn(x), atol=1e-5, rtol=1e-5), "toy shape mismatch"

    # 2) Small tiled shape exercising the time-tile carry + multi-tile batch.
    key2 = jax.random.PRNGKey(0)
    B2, T2 = 16, 768
    x2 = jax.random.normal(key2, (B2, T2), dtype=jnp.float32)
    y2 = jax.block_until_ready(pre_emphasis(x2, tile_b=8, tile_t=256))
    assert jnp.allclose(y2, ref_fn(x2), atol=1e-5, rtol=1e-5), "tiled mismatch"

    print("KERNEL_OK")
</pallas_src>

<mosaic_0001>
module attributes {stable_mosaic.version = 11 : i64} {
  func.func @_preemphasis_kernel(%arg0: i32, %arg1: i32, %arg2: memref<2x16xf32, #tpu.memory_space<vmem>>, %arg3: memref<2x16xf32, #tpu.memory_space<vmem>>, %arg4: memref<2x1xf32, #tpu.memory_space<vmem>>) attributes {dimension_semantics = [#tpu.dimension_semantics<parallel>, #tpu.dimension_semantics<arbitrary>], iteration_bounds = array<i64: 1, 1>, scalar_prefetch = 0 : i64, scratch_operands = 1 : i64, tpu.core_type = #tpu.core_type<tc>, window_params = [{transform_indices = @transform_0, window_bounds = array<i64: 2, 16>}, {transform_indices = @transform_1, window_bounds = array<i64: 2, 16>}]} {
    %c0 = arith.constant 0 : index
    %c0_0 = arith.constant 0 : index
    %0 = vector.load %arg2[%c0, %c0_0] : memref<2x16xf32, #tpu.memory_space<vmem>>, vector<2x16xf32>
    %c0_i32 = arith.constant 0 : i32
    %1 = arith.cmpi eq, %arg1, %c0_i32 : i32
    %2 = arith.extui %1 : i1 to i32
    %c0_i32_1 = arith.constant 0 : i32
    %3 = arith.cmpi ne, %2, %c0_i32_1 : i32
    scf.if %3 {
      %17 = vector.extract_strided_slice %0 {offsets = [0, 1], sizes = [2, 1], strides = [1, 1]} : vector<2x16xf32> to vector<2x1xf32>
      %c0_11 = arith.constant 0 : index
      %c0_12 = arith.constant 0 : index
      %18 = vector.load %arg4[%c0_11, %c0_12] : memref<2x1xf32, #tpu.memory_space<vmem>>, vector<2x1xf32>
      tpu.vector_store %arg4[%c0_11, %c0_12], %17 {strides = array<i32>} : memref<2x1xf32, #tpu.memory_space<vmem>>, vector<2x1xf32>,
    } else {
    }
    %c0_2 = arith.constant 0 : index
    %c0_3 = arith.constant 0 : index
    %4 = vector.load %arg4[%c0_2, %c0_3] : memref<2x1xf32, #tpu.memory_space<vmem>>, vector<2x1xf32>
    %c1_i32 = arith.constant 1 : i32
    %5 = tpu.dynamic_rotate %0 by %c1_i32 dim 1 : vector<2x16xf32>, i32 -> vector<2x16xf32>
    %cst = arith.constant 9.700000e-01 : f32
    %6 = vector.broadcast %cst : f32 to vector<2x16xf32>
    %7 = arith.mulf %6, %5 : vector<2x16xf32>
    %8 = arith.subf %0, %7 : vector<2x16xf32>
    %c0_4 = arith.constant 0 : index
    %c0_5 = arith.constant 0 : index
    %9 = vector.load %arg3[%c0_4, %c0_5] : memref<2x16xf32, #tpu.memory_space<vmem>>, vector<2x16xf32>
    tpu.vector_store %arg3[%c0_4, %c0_5], %8 {strides = array<i32>} : memref<2x16xf32, #tpu.memory_space<vmem>>, vector<2x16xf32>,
    %10 = vector.extract_strided_slice %0 {offsets = [0, 0], sizes = [2, 1], strides = [1, 1]} : vector<2x16xf32> to vector<2x1xf32>
    %cst_6 = arith.constant 9.700000e-01 : f32
    %11 = vector.broadcast %cst_6 : f32 to vector<2x1xf32>
    %12 = arith.mulf %11, %4 : vector<2x1xf32>
    %13 = arith.subf %10, %12 : vector<2x1xf32>
    %c0_7 = arith.constant 0 : index
    %c0_8 = arith.constant 0 : index
    %14 = vector.load %arg3[%c0_7, %c0_8] : memref<2x16xf32, #tpu.memory_space<vmem>>, vector<2x1xf32>
    tpu.vector_store %arg3[%c0_7, %c0_8], %13 {strides = array<i32>} : memref<2x16xf32, #tpu.memory_space<vmem>>, vector<2x1xf32>,
    %15 = vector.extract_strided_slice %0 {offsets = [0, 15], sizes = [2, 1], strides = [1, 1]} : vector<2x16xf32> to vector<2x1xf32>
    %c0_9 = arith.constant 0 : index
    %c0_10 = arith.constant 0 : index
    %16 = vector.load %arg4[%c0_9, %c0_10] : memref<2x1xf32, #tpu.memory_space<vmem>>, vector<2x1xf32>
    tpu.vector_store %arg4[%c0_9, %c0_10], %15 {strides = array<i32>} : memref<2x1xf32, #tpu.memory_space<vmem>>, vector<2x1xf32>,
    return
  }
  func.func @transform_0(%arg0: i32, %arg1: i32) -> (i32, i32) {
    %c0_i32 = arith.constant 0 : i32
    return %arg0, %arg1 : i32, i32
  }
  func.func @transform_1(%arg0: i32, %arg1: i32) -> (i32, i32) {
    %c0_i32 = arith.constant 0 : i32
    return %arg0, %arg1 : i32, i32
  }
}

</mosaic_0001>

<llo_original>
// kernel: tpu_custom_call.1
$region0: #{tpu_custom_call.1}
  #allocation0 [shape = 'u32[]', space=smem, size = 0x4, offset = 0x4, fixed_abs, tag = 'smem constant byte address 0x4 - core index']
  #allocation1 [shape = 'u32[144,128]{1,0:T(1,128)}', space=vmem, size = 0x12000, scoped, tag = 'internal scratch']
  #allocation2 [shape = 'f32[2,1]{1,0:T(2,128)}', space=vmem, size = 0x400, scoped, tag = 'scratch operand']
  %s0 = inlined_call_operand.hbm [shape: f32[2,16], index: 0, kind: input, shape index: {}]
  %s1 = inlined_call_operand.hbm [shape: f32[2,16], index: 1, kind: output, shape index: {}]
  %s2 = sld [smem:[#allocation0]]
  $region22: #{tpu_custom_call.1} parent=0
    _
  %s4 = ssub.s32 1, %s2
  %s5 = scalar_select 0, %s4, %s2
  $region1: #{tpu_custom_call.1} parent=0
    #allocation3 [shape = 'u8[1024]{0}', space=vmem, size = 0x400, scoped, tag = 'input window, operand 0, single buffered']
    #allocation4 [shape = 's32[1]{0}', space=sflag, size = 0x4, scoped, tag = 'scoped memory for tpu_custom_call.1']
    #allocation5 [shape = 's32[1]{0}', space=sflag, size = 0x4, scoped, tag = 'scoped memory for tpu_custom_call.1']
    #allocation6 [shape = 'u8[1024]{0}', space=vmem, size = 0x400, scoped, tag = 'output window, operand 0, single buffered']
    %6 = vsyncpa [#allocation4], 0
    %7 = vsyncpa [#allocation5], 0
    // Predicated region
    $region2: #{tpu_custom_call.1} parent=1 // pred_check
      _
    $region3: #{tpu_custom_call.1} parent=1 // pred_check_branch
      %9 = sbr.rel (0) target = $region5
    $region4: #{tpu_custom_call.1} parent=1 // pred_region
      %s11 = ssub.s32 32, 32
      %12 = vsyncadd [#allocation4], %s11
      %s14 = sshll.u32 [#allocation3], 4
      %s15 = int_to_ptr.vmem [resolvable:$true] %s14
      %17 = dma.hbm_to_vmem [thread:$0]  %s0, 32, %s15, [#allocation4]
    $region5: #{tpu_custom_call.1} parent=1 // pred_fallthru
      _
    // Predicated region
    $region6: #{tpu_custom_call.1} parent=1 // pred_check
      _
    $region7: #{tpu_custom_call.1} parent=1 // pred_check_branch
      %19 = sbr.rel (0) target = $region9
    $region8: #{tpu_custom_call.1} parent=1 // pred_region
      %20 = dma.done [#allocation4], 32
    $region9: #{tpu_custom_call.1} parent=1 // pred_fallthru
      _
    %v21 = vld [vmem:[#allocation3] sm:$0x3]
    %p22 = scmp.eq.s32.totalorder 0, 0
    // Predicated region
    $region10: #{tpu_custom_call.1} parent=1 // pred_check
      %p23 = pneg %p22
    $region11: #{tpu_custom_call.1} parent=1 // pred_check_branch
      %25 = sbr.rel (%p23) target = $region13
    $region12: #{tpu_custom_call.1} parent=1 // pred_region
      %27 = vrot.lane.b32.xlu0 %v21, 127
      %v28 = vpop.permute.xlu0 %27
      %vm30 = vcmask 1024
      %31 = vst.msk [vmem:[#allocation2] sm:$0x3] %vm30, %v28
    $region13: #{tpu_custom_call.1} parent=1 // pred_fallthru
      _
    %v32 = vld [vmem:[#allocation2] sm:$0x3]
    %vm33 = vcmask 1047680
    %34 = vrot.lane.b32.xlu0 %v21, 16
    %v35 = vpop.permute.xlu0 %34
    %v36 = vsel %vm33, %v35, %v21
    %37 = vrot.lane.b32.xlu0 %v36, 16
    %v38 = vpop.permute.xlu0 %37
    %v39 = vsel %vm33, %v38, %v21
    %v40 = vmul.f32 %v39, 0.97
    %42 = vrot.lane.b32.xlu0 %v40, 113
    %v43 = vpop.permute.xlu0 %42
    %v45 = vsub.f32 %v21, %v43
    %vm46 = vcmask 123904
    %47 = vst.msk [vmem:[#allocation6] sm:$0x3] %vm46, %v45
    %v48 = vmul.f32 %v32, 0.97
    %v49 = vsub.f32 %v21, %v48
    %vm50 = vcmask 1024
    %51 = vst.msk [vmem:[#allocation6] sm:$0x3] %vm50, %v49
    %53 = vrot.lane.b32.xlu0 %v21, 113
    %v54 = vpop.permute.xlu0 %53
    %56 = vst.msk [vmem:[#allocation2] sm:$0x3] %vm50, %v54
    // Predicated region
    $region14: #{tpu_custom_call.1} parent=1 // pred_check
      _
    $region15: #{tpu_custom_call.1} parent=1 // pred_check_branch
      %58 = sbr.rel (0) target = $region17
    $region16: #{tpu_custom_call.1} parent=1 // pred_region
      %s60 = ssub.s32 32, 32
      %61 = vsyncadd [#allocation5], %s60
      %s63 = sshll.u32 [#allocation6], 4
      %s64 = int_to_ptr.vmem [resolvable:$true] %s63
      %66 = dma.vmem_to_hbm [thread:$0]  %s64, 32, %s1, [#allocation5]
    $region17: #{tpu_custom_call.1} parent=1 // pred_fallthru
      _
    // Predicated region
    $region18: #{tpu_custom_call.1} parent=1 // pred_check
      _
    $region19: #{tpu_custom_call.1} parent=1 // pred_check_branch
      %68 = sbr.rel (0) target = $region21
    $region20: #{tpu_custom_call.1} parent=1 // pred_region
      %69 = dma.done [#allocation5], 32
    $region21: #{tpu_custom_call.1} parent=1 // pred_fallthru
      _
    %70 = vsyncpa [#allocation4], 1
    %71 = vsyncpa [#allocation5], 1

</llo_original>
